<compile_context>
chip_gen: v6e
topology: v6e:2x2x1
jax: 0.10.0
libtpu: 0.0.40
codegen_flags: <defaults>
</compile_context>

<pallas_src>
import functools

import jax
import jax.numpy as jnp
from jax import lax
from jax.experimental import pallas as pl
from jax.experimental.pallas import tpu as pltpu


def _round_up(a: int, b: int) -> int:
    return ((a + b - 1) // b) * b


def _block_diag(w, p: int):
    """(a, b) -> (p*a, p*b) block-diagonal replication of w."""
    a, b = w.shape
    eye = jnp.eye(p, dtype=w.dtype)
    return (eye[:, None, :, None] * w[None, :, None, :]).reshape(p * a, p * b)


def time2vec_kernel(x_ref, w_enc_ref, b_enc_ref, w_dec_ref, b_dec_ref, out_ref,
                    *, feature_num: int):
    F = feature_num
    x = x_ref[...]                                   # (tile, P*F) f32, lane-dense

    # Fused block-diagonal encode matmul: (tile, P*F) @ (P*F, P*2F).
    # Bias already carries the +pi/2 phase fold on the cos columns.
    sc = jnp.dot(x, w_enc_ref[...], preferred_element_type=jnp.float32) + b_enc_ref[...]

    # Per-column select with period F: columns where (col % F) == F-1 are the two
    # linear branches (wb0_sin / wb0_cos) of each packed sub-row; everything else is
    # sin (the cos branch became sin via the bias phase fold).
    col = lax.broadcasted_iota(jnp.int32, (1, sc.shape[-1]), 1)
    is_linear = (col % F) == (F - 1)
    enc = jnp.where(is_linear, sc, jnp.sin(sc))

    # Block-diagonal stacked decode: enc @ blkdiag([Wdec; Wdec]) == per-sub-row
    # (sin_enc + cos_enc) @ Wdec  -> (tile, P*to_num).
    out = jnp.dot(enc, w_dec_ref[...], preferred_element_type=jnp.float32) + b_dec_ref[...]
    out_ref[...] = out.astype(out_ref.dtype)


def time2vec_forward(x, params, *, tile_n=8192):
    """x: (..., F) -> (..., to_num). Whole forward runs in a single Pallas kernel.

    tile_n is the number of ORIGINAL rows per grid step (sweepable; 8K-32K is the
    intended range for large inputs).
    """
    wsin, bsin, wcos, bcos, wdec, bdec = params
    F = wsin.shape[0]
    to_num = wdec.shape[1]

    # Pack factor: pack P rows into the lane dim so the packed input width is a
    # multiple of 128 (lane-dense). Fallback to P=1 if F doesn't divide 128.
    P = 128 // F if (F <= 128 and 128 % F == 0) else 1
    Kp = P * F              # packed input width
    Ep = P * 2 * F          # packed encode width
    Op = P * to_num         # packed output width

    # ---- wrapper-side weight fusion (tiny, done once) -------------------------------
    w_enc = jnp.concatenate([wsin, wcos], axis=1)                    # (F, 2F)
    b_enc = jnp.concatenate([bsin, bcos], axis=1)                    # (1, 2F)
    # cos(x) == sin(x + pi/2): fold the phase into the cos-branch bias columns
    # [F, 2F-2] (the linear column 2F-1 is untouched).
    cols = jnp.arange(2 * F)
    phase = jnp.where((cols >= F) & (cols < 2 * F - 1), jnp.pi / 2.0, 0.0)
    b_enc = (b_enc + phase[None, :]).astype(b_enc.dtype)
    w_dec2 = jnp.concatenate([wdec, wdec], axis=0)                   # (2F, to_num)

    w_enc_bd = _block_diag(w_enc, P)                                 # (P*F,  P*2F)
    w_dec_bd = _block_diag(w_dec2, P)                                # (P*2F, P*to_num)
    b_enc_bd = jnp.tile(b_enc, (1, P))                               # (1, P*2F)
    b_dec_bd = jnp.tile(bdec, (1, P))                                # (1, P*to_num)

    # ---- flatten + row-pack ----------------------------------------------------------
    lead_shape = x.shape[:-1]
    x2d = x.reshape(-1, F)
    N = x2d.shape[0]
    Np = pl.cdiv(N, P)                     # logical packed rows
    np8 = _round_up(max(Np, 1), 8)

    # ---- tile selection (packed rows) ------------------------------------------------
    tile = min(max(8, _round_up(pl.cdiv(tile_n, P), 8)), np8)
    # Keep >=8 grid steps when there is enough work (>=4 per v7x TensorCore so both
    # cores pipeline); tiny inputs just take fewer steps.
    min_steps = 8
    if np8 // tile < min_steps and np8 >= min_steps * 8:
        tile = max(8, _round_up(pl.cdiv(np8, min_steps), 8))

    # ---- VMEM budget from true (8,128)-tiled footprints ------------------------------
    def tb(rows, cols_):
        return _round_up(max(rows, 1), 8) * _round_up(max(cols_, 1), 128) * 4

    def vmem_needed(t):
        return (2 * tb(t, Kp)               # x tile (double-buffered)
                + 2 * tb(t, Op)             # out tile (double-buffered, lane-padded)
                + tb(Kp, Ep) + tb(1, Ep)    # encode weight + bias (Buffered(1))
                + tb(Ep, Op) + tb(1, Op)    # decode weight + bias (Buffered(1))
                + 3 * tb(t, Ep))            # sc / enc intermediates headroom

    try:
        vmem_total = int(pltpu.get_tpu_info().vmem_capacity_bytes)
    except Exception:
        vmem_total = 64 << 20               # conservative (v7x per-TC VMEM)
    vmem_cap = (40 << 20) if vmem_total <= (64 << 20) else (96 << 20)

    while tile > 8 and vmem_needed(tile) > vmem_cap:
        tile = max(8, _round_up(tile // 2, 8))
    vmem_bytes = int(min(max(vmem_needed(tile), 4 << 20), vmem_cap))

    # ---- pad rows, pack into lanes ----------------------------------------------------
    Np_pad = _round_up(max(Np, 1), tile)
    N_pad = Np_pad * P
    if N_pad != N:
        x2d = jnp.pad(x2d, ((0, N_pad - N), (0, 0)))
    x_packed = x2d.reshape(Np_pad, Kp)      # free: contiguous HBM reshape
    grid = (Np_pad // tile,)

    const = lambda i: (0, 0)

    out_packed = pl.pallas_call(
        functools.partial(time2vec_kernel, feature_num=F),
        out_shape=jax.ShapeDtypeStruct((Np_pad, Op), x.dtype),
        grid_spec=pltpu.PrefetchScalarGridSpec(
            num_scalar_prefetch=0,
            grid=grid,
            in_specs=[
                pl.BlockSpec((tile, Kp), lambda i: (i, 0)),                         # x
                pl.BlockSpec((Kp, Ep), const, pipeline_mode=pl.Buffered(1)),        # W_enc
                pl.BlockSpec((1, Ep), const, pipeline_mode=pl.Buffered(1)),         # b_enc
                pl.BlockSpec((Ep, Op), const, pipeline_mode=pl.Buffered(1)),        # W_dec
                pl.BlockSpec((1, Op), const, pipeline_mode=pl.Buffered(1)),         # b_dec
            ],
            out_specs=pl.BlockSpec((tile, Op), lambda i: (i, 0)),
        ),
        compiler_params=pltpu.CompilerParams(
            dimension_semantics=("parallel",),
            vmem_limit_bytes=vmem_bytes,
        ),
    )(x_packed, w_enc_bd, b_enc_bd, w_dec_bd, b_dec_bd)

    out2d = out_packed.reshape(N_pad, to_num)[:N]
    return out2d.reshape(*lead_shape, to_num)


def init_params(key, feature_num, to_num=2, dtype=jnp.float32):
    """Deterministic synthetic init matching nn.Linear shapes.

    PyTorch Linear stores weight as (out, in); we build the transposed (in, out)
    form, and fuse each (F-1)-out / 1-out branch pair into a single (F, F) weight
    (concatenation along the output axis == torch.cat(..., -1)).
    """
    ks = jax.random.split(key, 10)
    F = feature_num
    bound = 1.0 / jnp.sqrt(F)

    def lin(kw, kb, out_dim):
        w = jax.random.uniform(kw, (out_dim, F), dtype, -bound, bound)  # (out, in)
        b = jax.random.uniform(kb, (out_dim,), dtype, -bound, bound)
        return w, b

    w_sin, b_sin = lin(ks[0], ks[1], F - 1)
    w0_sin, b0_sin = lin(ks[2], ks[3], 1)
    w_cos, b_cos = lin(ks[4], ks[5], F - 1)
    w0_cos, b0_cos = lin(ks[6], ks[7], 1)
    w_dec, b_dec = lin(ks[8], ks[9], to_num)

    wsin_full = jnp.concatenate([w_sin, w0_sin], axis=0).T          # (F, F)
    bsin_full = jnp.concatenate([b_sin, b0_sin], axis=0)[None, :]   # (1, F)
    wcos_full = jnp.concatenate([w_cos, w0_cos], axis=0).T          # (F, F)
    bcos_full = jnp.concatenate([b_cos, b0_cos], axis=0)[None, :]   # (1, F)
    wdec_t = w_dec.T                                                # (F, to_num)
    bdec = b_dec[None, :]                                           # (1, to_num)

    return (wsin_full, bsin_full, wcos_full, bcos_full, wdec_t, bdec)


def time2vec_ref(x, params):
    """Pure-JAX reference of the PyTorch forward (for verification)."""
    wsin, bsin, wcos, bcos, wdec, bdec = params
    F = wsin.shape[0]
    s = x @ wsin + bsin[0]
    c = x @ wcos + bcos[0]
    sin_enc = jnp.concatenate([jnp.sin(s[..., :F - 1]), s[..., F - 1:]], axis=-1)
    cos_enc = jnp.concatenate([jnp.cos(c[..., :F - 1]), c[..., F - 1:]], axis=-1)
    return (sin_enc + cos_enc) @ wdec + bdec[0]


if __name__ == "__main__":
    feature_num = 16
    to_num = 2
    batch, seq = 2, 8   # flattened N = 16 rows -> 2 packed rows of width 128

    key = jax.random.PRNGKey(0)
    kx, kp = jax.random.split(key)
    x = jax.random.normal(kx, (batch, seq, feature_num), dtype=jnp.float32)
    params = init_params(kp, feature_num, to_num)

    out = time2vec_forward(x, params)
    out = jax.block_until_ready(out)

    ref = time2vec_ref(x, params)
    assert out.shape == (batch, seq, to_num)
    assert jnp.allclose(out, ref, atol=1e-5, rtol=1e-5), "mismatch vs reference"

    # Larger, non-divisible N with a small tile to exercise padding, row-packing and a
    # multi-step grid (pipelined x/out tiles).
    x_big = jax.random.normal(kx, (3, 70, feature_num), dtype=jnp.float32)
    out_big = jax.block_until_ready(time2vec_forward(x_big, params, tile_n=64))
    assert jnp.allclose(out_big, time2vec_ref(x_big, params), atol=1e-5, rtol=1e-5)

    print("KERNEL_OK")
</pallas_src>

<mosaic_0001>
module attributes {stable_mosaic.version = 11 : i64} {
  func.func @time2vec_kernel(%arg0: i32, %arg1: memref<8x128xf32, #tpu.memory_space<vmem>>, %arg2: memref<128x256xf32, #tpu.memory_space<vmem>>, %arg3: memref<1x256xf32, #tpu.memory_space<vmem>>, %arg4: memref<256x16xf32, #tpu.memory_space<vmem>>, %arg5: memref<1x16xf32, #tpu.memory_space<vmem>>, %arg6: memref<8x16xf32, #tpu.memory_space<vmem>>) attributes {dimension_semantics = [#tpu.dimension_semantics<parallel>], iteration_bounds = array<i64: 1>, scalar_prefetch = 0 : i64, scratch_operands = 0 : i64, tpu.core_type = #tpu.core_type<tc>, window_params = [{transform_indices = @transform_0, window_bounds = array<i64: 8, 128>}, {pipeline_mode = #tpu.pipeline_mode<synchronous>, transform_indices = @transform_1, window_bounds = array<i64: 128, 256>}, {pipeline_mode = #tpu.pipeline_mode<synchronous>, transform_indices = @transform_2, window_bounds = array<i64: 1, 256>}, {pipeline_mode = #tpu.pipeline_mode<synchronous>, transform_indices = @transform_3, window_bounds = array<i64: 256, 16>}, {pipeline_mode = #tpu.pipeline_mode<synchronous>, transform_indices = @transform_4, window_bounds = array<i64: 1, 16>}, {transform_indices = @transform_5, window_bounds = array<i64: 8, 16>}]} {
    %c0 = arith.constant 0 : index
    %c0_0 = arith.constant 0 : index
    %0 = vector.load %arg1[%c0, %c0_0] : memref<8x128xf32, #tpu.memory_space<vmem>>, vector<8x128xf32>
    %c0_1 = arith.constant 0 : index
    %c0_2 = arith.constant 0 : index
    %1 = vector.load %arg2[%c0_1, %c0_2] : memref<128x256xf32, #tpu.memory_space<vmem>>, vector<128x256xf32>
    %cst = arith.constant dense<0.000000e+00> : vector<8x256xf32>
    %2 = tpu.matmul %0, %1, %cst {dimension_numbers = #tpu.dot_dimension_numbers<[1], [0], [0], [1], [0, 0, 1, 1], [], []>} : vector<8x128xf32>, vector<128x256xf32>, vector<8x256xf32> -> vector<8x256xf32>
    %c0_3 = arith.constant 0 : index
    %c0_4 = arith.constant 0 : index
    %3 = vector.load %arg3[%c0_3, %c0_4] : memref<1x256xf32, #tpu.memory_space<vmem>>, vector<1x256xf32>
    %4 = vector.broadcast %3 : vector<1x256xf32> to vector<8x256xf32>
    %5 = arith.addf %2, %4 : vector<8x256xf32>
    %6 = tpu.iota {dimensions = array<i32: 1>} : vector<1x256xi32>
    %c16_i32 = arith.constant 16 : i32
    %c0_i32 = arith.constant 0 : i32
    %7 = arith.cmpi eq, %c16_i32, %c0_i32 : i32
    %c1_i32 = arith.constant 1 : i32
    %8 = arith.select %7, %c1_i32, %c16_i32 : i32
    %9 = vector.broadcast %8 : i32 to vector<1x256xi32>
    %10 = arith.remsi %6, %9 : vector<1x256xi32>
    %c0_i32_5 = arith.constant 0 : i32
    %11 = vector.broadcast %c0_i32_5 : i32 to vector<1x256xi32>
    %12 = arith.cmpi ne, %10, %11 : vector<1x256xi32>
    %c0_i32_6 = arith.constant 0 : i32
    %13 = vector.broadcast %c0_i32_6 : i32 to vector<1x256xi32>
    %14 = arith.cmpi slt, %10, %13 : vector<1x256xi32>
    %c0_i32_7 = arith.constant 0 : i32
    %15 = arith.cmpi slt, %8, %c0_i32_7 : i32
    %16 = vector.broadcast %15 : i1 to vector<1x256xi1>
    %17 = vector.broadcast %16 : vector<1x256xi1> to vector<1x256xi1>
    %18 = arith.xori %14, %17 : vector<1x256xi1>
    %19 = arith.andi %18, %12 : vector<1x256xi1>
    %20 = vector.broadcast %8 : i32 to vector<1x256xi32>
    %21 = arith.addi %10, %20 : vector<1x256xi32>
    %22 = arith.select %19, %21, %10 : vector<1x256xi1>, vector<1x256xi32>
    %c15_i32 = arith.constant 15 : i32
    %23 = vector.broadcast %c15_i32 : i32 to vector<1x256xi32>
    %24 = arith.cmpi eq, %22, %23 : vector<1x256xi32>
    %25 = math.sin %5 : vector<8x256xf32>
    %26 = vector.shape_cast %24 : vector<1x256xi1> to vector<1x256xi1>
    %27 = vector.broadcast %26 : vector<1x256xi1> to vector<8x256xi1>
    %28 = arith.select %27, %5, %25 : vector<8x256xi1>, vector<8x256xf32>
    %c0_8 = arith.constant 0 : index
    %c0_9 = arith.constant 0 : index
    %29 = vector.load %arg4[%c0_8, %c0_9] : memref<256x16xf32, #tpu.memory_space<vmem>>, vector<256x16xf32>
    %cst_10 = arith.constant dense<0.000000e+00> : vector<8x16xf32>
    %30 = tpu.matmul %28, %29, %cst_10 {dimension_numbers = #tpu.dot_dimension_numbers<[1], [0], [0], [1], [0, 0, 1, 1], [], []>} : vector<8x256xf32>, vector<256x16xf32>, vector<8x16xf32> -> vector<8x16xf32>
    %c0_11 = arith.constant 0 : index
    %c0_12 = arith.constant 0 : index
    %31 = vector.load %arg5[%c0_11, %c0_12] : memref<1x16xf32, #tpu.memory_space<vmem>>, vector<1x16xf32>
    %32 = vector.broadcast %31 : vector<1x16xf32> to vector<8x16xf32>
    %33 = arith.addf %30, %32 : vector<8x16xf32>
    %c0_13 = arith.constant 0 : index
    %c0_14 = arith.constant 0 : index
    %34 = vector.load %arg6[%c0_13, %c0_14] : memref<8x16xf32, #tpu.memory_space<vmem>>, vector<8x16xf32>
    tpu.vector_store %arg6[%c0_13, %c0_14], %33 {strides = array<i32>} : memref<8x16xf32, #tpu.memory_space<vmem>>, vector<8x16xf32>,
    return
  }
  func.func @transform_0(%arg0: i32) -> (i32, i32) {
    %c0_i32 = arith.constant 0 : i32
    %c0_i32_0 = arith.constant 0 : i32
    return %arg0, %c0_i32 : i32, i32
  }
  func.func @transform_1(%arg0: i32) -> (i32, i32) {
    %c0_i32 = arith.constant 0 : i32
    %c0_i32_0 = arith.constant 0 : i32
    %c0_i32_1 = arith.constant 0 : i32
    return %c0_i32, %c0_i32_0 : i32, i32
  }
  func.func @transform_2(%arg0: i32) -> (i32, i32) {
    %c0_i32 = arith.constant 0 : i32
    %c0_i32_0 = arith.constant 0 : i32
    %c0_i32_1 = arith.constant 0 : i32
    return %c0_i32, %c0_i32_0 : i32, i32
  }
  func.func @transform_3(%arg0: i32) -> (i32, i32) {
    %c0_i32 = arith.constant 0 : i32
    %c0_i32_0 = arith.constant 0 : i32
    %c0_i32_1 = arith.constant 0 : i32
    return %c0_i32, %c0_i32_0 : i32, i32
  }
  func.func @transform_4(%arg0: i32) -> (i32, i32) {
    %c0_i32 = arith.constant 0 : i32
    %c0_i32_0 = arith.constant 0 : i32
    %c0_i32_1 = arith.constant 0 : i32
    return %c0_i32, %c0_i32_0 : i32, i32
  }
  func.func @transform_5(%arg0: i32) -> (i32, i32) {
    %c0_i32 = arith.constant 0 : i32
    %c0_i32_0 = arith.constant 0 : i32
    return %arg0, %c0_i32 : i32, i32
  }
}

</mosaic_0001>

<llo_original>
// kernel: tpu_custom_call.1
$region0: #{tpu_custom_call.1}
  #allocation0 [shape = 'u32[]', space=smem, size = 0x4, offset = 0x4, fixed_abs, tag = 'smem constant byte address 0x4 - core index']
  #allocation1 [shape = 'u32[144,128]{1,0:T(1,128)}', space=vmem, size = 0x12000, scoped, tag = 'internal scratch']
  %s0 = inlined_call_operand.vmem [shape: f32[8,128], index: 0, kind: input, shape index: {}]
  %s1 = inlined_call_operand.vmem [shape: f32[128,256], index: 1, kind: input, shape index: {}]
  %s2 = inlined_call_operand.vmem [shape: f32[1,256], index: 2, kind: input, shape index: {}]
  %s3 = inlined_call_operand.vmem [shape: f32[256,16], index: 3, kind: input, shape index: {}]
  %s4 = inlined_call_operand.vmem [shape: f32[1,16], index: 4, kind: input, shape index: {}]
  %s5 = inlined_call_operand.hbm [shape: f32[8,16], index: 5, kind: output, shape index: {}]
  %s6 = sld [smem:[#allocation0]]
  $region30: #{tpu_custom_call.1} parent=0
    _
  %s8 = ssub.s32 1, %s6
  %s9 = scalar_select 0, %s8, %s6
  $region1: #{tpu_custom_call.1} parent=0
    #allocation2 [shape = 'u8[4096]{0}', space=vmem, size = 0x1000, scoped, tag = 'output window, operand 0, single buffered']
    #allocation3 [shape = 's32[1]{0}', space=sflag, size = 0x4, scoped, tag = 'scoped memory for tpu_custom_call.1']
    %10 = vsyncpa [#allocation3], 0
    // Predicated region
    $region2: #{tpu_custom_call.1} parent=1 // pred_check
      _
    $region3: #{tpu_custom_call.1} parent=1 // pred_check_branch
      %12 = sbr.rel (0) target = $region5
    $region4: #{tpu_custom_call.1} parent=1 // pred_region
      _
    $region5: #{tpu_custom_call.1} parent=1 // pred_fallthru
      _
    // Predicated region
    $region6: #{tpu_custom_call.1} parent=1 // pred_check
      _
    $region7: #{tpu_custom_call.1} parent=1 // pred_check_branch
      %14 = sbr.rel (0) target = $region9
    $region8: #{tpu_custom_call.1} parent=1 // pred_region
      _
    $region9: #{tpu_custom_call.1} parent=1 // pred_fallthru
      _
    // Predicated region
    $region10: #{tpu_custom_call.1} parent=1 // pred_check
      _
    $region11: #{tpu_custom_call.1} parent=1 // pred_check_branch
      %16 = sbr.rel (0) target = $region13
    $region12: #{tpu_custom_call.1} parent=1 // pred_region
      _
    $region13: #{tpu_custom_call.1} parent=1 // pred_fallthru
      _
    // Predicated region
    $region14: #{tpu_custom_call.1} parent=1 // pred_check
      _
    $region15: #{tpu_custom_call.1} parent=1 // pred_check_branch
      %18 = sbr.rel (0) target = $region17
    $region16: #{tpu_custom_call.1} parent=1 // pred_region
      _
    $region17: #{tpu_custom_call.1} parent=1 // pred_fallthru
      _
    // Predicated region
    $region18: #{tpu_custom_call.1} parent=1 // pred_check
      _
    $region19: #{tpu_custom_call.1} parent=1 // pred_check_branch
      %20 = sbr.rel (0) target = $region21
    $region20: #{tpu_custom_call.1} parent=1 // pred_region
      _
    $region21: #{tpu_custom_call.1} parent=1 // pred_fallthru
      _
    %v21 = vld [vmem:[%s0] sm:$0xff]
    %v22 = vld [vmem:[%s1] sm:$0xff]
    %v23 = vld [vmem:[%s1 + $0x8] sm:$0xff]
    %v24 = vld [vmem:[%s1 + $0x10] sm:$0xff]
    %v25 = vld [vmem:[%s1 + $0x18] sm:$0xff]
    %v26 = vld [vmem:[%s1 + $0x20] sm:$0xff]
    %v27 = vld [vmem:[%s1 + $0x28] sm:$0xff]
    %v28 = vld [vmem:[%s1 + $0x30] sm:$0xff]
    %v29 = vld [vmem:[%s1 + $0x38] sm:$0xff]
    %v30 = vld [vmem:[%s1 + $0x40] sm:$0xff]
    %v31 = vld [vmem:[%s1 + $0x48] sm:$0xff]
    %v32 = vld [vmem:[%s1 + $0x50] sm:$0xff]
    %v33 = vld [vmem:[%s1 + $0x58] sm:$0xff]
    %v34 = vld [vmem:[%s1 + $0x60] sm:$0xff]
    %v35 = vld [vmem:[%s1 + $0x68] sm:$0xff]
    %v36 = vld [vmem:[%s1 + $0x70] sm:$0xff]
    %v37 = vld [vmem:[%s1 + $0x78] sm:$0xff]
    %v38 = vld [vmem:[%s1 + $0x80] sm:$0xff]
    %v39 = vld [vmem:[%s1 + $0x88] sm:$0xff]
    %v40 = vld [vmem:[%s1 + $0x90] sm:$0xff]
    %v41 = vld [vmem:[%s1 + $0x98] sm:$0xff]
    %v42 = vld [vmem:[%s1 + $0xa0] sm:$0xff]
    %v43 = vld [vmem:[%s1 + $0xa8] sm:$0xff]
    %v44 = vld [vmem:[%s1 + $0xb0] sm:$0xff]
    %v45 = vld [vmem:[%s1 + $0xb8] sm:$0xff]
    %v46 = vld [vmem:[%s1 + $0xc0] sm:$0xff]
    %v47 = vld [vmem:[%s1 + $0xc8] sm:$0xff]
    %v48 = vld [vmem:[%s1 + $0xd0] sm:$0xff]
    %v49 = vld [vmem:[%s1 + $0xd8] sm:$0xff]
    %v50 = vld [vmem:[%s1 + $0xe0] sm:$0xff]
    %v51 = vld [vmem:[%s1 + $0xe8] sm:$0xff]
    %v52 = vld [vmem:[%s1 + $0xf0] sm:$0xff]
    %v53 = vld [vmem:[%s1 + $0xf8] sm:$0xff]
    %v54 = vld [vmem:[%s2] sm:$0x3]
    %v56 = vlaneseq
    %v57 = vshrl.u32 %v56, 7
    %v58 = vsub.s32 0, %v57
    %v59 = vrot.slane %v54, %v58
    %v60 = vlaneseq
    %v61 = vshrl.u32 %v60, 7
    %v62 = vsub.s32 1, %v61
    %v63 = vrot.slane %v54, %v62
    %66 = vmatprep.subr.mxu0 %v53
    %67 = vmatpush1.msra.mxu0 %v52
    %68 = vmatprep.subr.mxu0 %v51
    %69 = vmatpush1.msra.mxu0 %v50
    %70 = vmatprep.subr.mxu0 %v49
    %71 = vmatpush1.msra.mxu0 %v48
    %72 = vmatprep.subr.mxu0 %v47
    %73 = vmatpush1.msra.mxu0 %v46
    %74 = vmatprep.subr.mxu0 %v45
    %75 = vmatpush1.msra.mxu0 %v44
    %76 = vmatprep.subr.mxu0 %v43
    %77 = vmatpush1.msra.mxu0 %v42
    %78 = vmatprep.subr.mxu0 %v41
    %79 = vmatpush1.msra.mxu0 %v40
    %80 = vmatprep.subr.mxu0 %v39
    %81 = vmatpush1.msra.mxu0 %v38
    %82 = vmatprep.subr.mxu0 %v37
    %83 = vmatpush1.msra.mxu0 %v36
    %84 = vmatprep.subr.mxu0 %v35
    %85 = vmatpush1.msra.mxu0 %v34
    %86 = vmatprep.subr.mxu0 %v33
    %87 = vmatpush1.msra.mxu0 %v32
    %88 = vmatprep.subr.mxu0 %v31
    %89 = vmatpush1.msra.mxu0 %v30
    %90 = vmatprep.subr.mxu0 %v29
    %91 = vmatpush1.msra.mxu0 %v28
    %92 = vmatprep.subr.mxu0 %v27
    %93 = vmatpush1.msra.mxu0 %v26
    %94 = vmatprep.subr.mxu0 %v25
    %95 = vmatpush1.msra.mxu0 %v24
    %96 = vmatprep.subr.mxu0 %v23
    %97 = vmatpush1.msra.mxu0 %v22
    %98 = vmatprep.subr.mxu0 0.0
    %99 = vmatpush2.msra.mxu0 0.0
    %100 = vmatprep.subr.mxu0 0.0
    %101 = vmatpush2.msra.mxu0 0.0
    %102 = vmatprep.subr.mxu0 0.0
    %103 = vmatpush2.msra.mxu0 0.0
    %104 = vmatprep.subr.mxu0 0.0
    %105 = vmatpush2.msra.mxu0 0.0
    %106 = vmatprep.subr.mxu0 0.0
    %107 = vmatpush2.msra.mxu0 0.0
    %108 = vmatprep.subr.mxu0 0.0
    %109 = vmatpush2.msra.mxu0 0.0
    %110 = vmatprep.subr.mxu0 0.0
    %111 = vmatpush2.msra.mxu0 0.0
    %112 = vmatprep.subr.mxu0 0.0
    %113 = vmatpush2.msra.mxu0 0.0
    %114 = vmatprep.subr.mxu0 0.0
    %115 = vmatpush2.msra.mxu0 0.0
    %116 = vmatprep.subr.mxu0 0.0
    %117 = vmatpush2.msra.mxu0 0.0
    %118 = vmatprep.subr.mxu0 0.0
    %119 = vmatpush2.msra.mxu0 0.0
    %120 = vmatprep.subr.mxu0 0.0
    %121 = vmatpush2.msra.mxu0 0.0
    %122 = vmatprep.subr.mxu0 0.0
    %123 = vmatpush2.msra.mxu0 0.0
    %124 = vmatprep.subr.mxu0 0.0
    %125 = vmatpush2.msra.mxu0 0.0
    %126 = vmatprep.subr.mxu0 0.0
    %127 = vmatpush2.msra.mxu0 0.0
    %128 = vmatprep.subr.mxu0 0.0
    %129 = vmatpush2.msra.mxu0 0.0
    %130 = vmatprep.mubr.f32.mxu0 0.0
    %131 = vmatmul.mubr.f32.gmra.mxu0 %v21
    %v132 = vpop.f32.mrf.mxu0
    %v133 = vadd.f32 %v59, %v132
    %v134 = vpop.f32.mrf.mxu0
    %v135 = vadd.f32 %v63, %v134
    %136 = vdwg.mxu0
    %v137 = vlaneseq
    %v138 = vand.u32 %v137, 127
    %v139 = vadd.s32 %v138, 128
    %vm140 = vcmp.lt.s32.totalorder %v138, 0
    %v141 = vsub.s32 0, %v138
    %v142 = vsel %vm140, %v141, %v138
    %v143 = vshrl.u32 %v142, 4
    %v144 = vand.u32 %v142, 15
    %v145 = vsub.s32 0, %v144
    %v146 = vsel %vm140, %v145, %v144
    %vm147 = vcmp.lt.s32.totalorder %v139, 0
    %v148 = vsub.s32 0, %v139
    %v149 = vsel %vm147, %v148, %v139
    %v150 = vshrl.u32 %v149, 4
    %v151 = vand.u32 %v149, 15
    %v152 = vsub.s32 0, %v151
    %v153 = vsel %vm147, %v152, %v151
    %vm154 = vcmp.ne.s32.totalorder %v146, 0
    %vm155 = vcmp.ne.s32.totalorder %v153, 0
    %vm156 = vcmp.lt.s32.totalorder %v146, 0
    %vm157 = vcmp.lt.s32.totalorder %v153, 0
    %vm158 = vmand %vm156, %vm154
    %vm159 = vmand %vm157, %vm155
    %v160 = vadd.s32 %v146, 16
    %v161 = vadd.s32 %v153, 16
    %v162 = vsel %vm158, %v160, %v146
    %v163 = vsel %vm159, %v161, %v153
    %vm164 = vcmp.eq.s32.totalorder %v162, 15
    %vm165 = vcmp.eq.s32.totalorder %v163, 15
    %v166 = vand.u32 2147483647, %v133
    %vm167 = vcmp.le.f32.partialorder %v166, 0.7853982
    %vm168 = vcmp.lt.s32.totalorder %v133, 0
    %v169 = vand.u32 %v133, 2139095040
    %v170 = vshrl.u32 %v169, 23
    %v171 = vsub.s32 %v170, 127
    %v172 = vand.u32 2147483647, %v133
    %v173 = vand.u32 %v172, 8388607
    %v174 = vor.u32 %v173, 8388608
    %v175 = vsub.s32 0, %v174
    %v176 = vadd.s32 %v171, 1
    %vm177 = vcmp.gt.s32.totalorder %v176, 0
    %v178 = vsel %vm177, %v176, 0
    %v179 = vshrl.u32 %v178, 5
    %v180 = vand.u32 %v178, 31
    %v181 = vsub.s32 32, %v180
    %v182 = vshrl.u32 683565275, %v181
    %v183 = vshll.u32 683565275, %v180
    %v184 = vshrl.u32 2475754826, %v181
    %v185 = vor.u32 %v183, %v184
    %v186 = vshll.u32 2475754826, %v180
    %v187 = vshrl.u32 2131351028, %v181
    %v188 = vor.u32 %v186, %v187
    %v189 = vshll.u32 2131351028, %v180
    %v190 = vshrl.u32 2102212464, %v181
    %v191 = vor.u32 %v189, %v190
    %v192 = vshll.u32 2102212464, %v180
    %v193 = vshrl.u32 920167782, %v181
    %v194 = vor.u32 %v192, %v193
    %v195 = vshll.u32 920167782, %v180
    %v196 = vshrl.u32 1326507024, %v181
    %v197 = vor.u32 %v195, %v196
    %vm198 = vcmp.lt.s32.totalorder %v179, 1
    %vm199 = vcmp.lt.s32.totalorder %v179, 2
    %vm200 = vcmp.lt.s32.totalorder %v179, 3
    %vm201 = vcmp.lt.s32.totalorder %v179, 4
    %v202 = vsel %vm198, %v182, %v185
    %v203 = vsel %vm201, %v191, 2102212464
    %v204 = vsel %vm200, %v188, %v203
    %v205 = vsel %vm199, %v202, %v204
    %v206 = vsel %vm198, %v185, %v188
    %v207 = vsel %vm201, %v194, 920167782
    %v208 = vsel %vm200, %v191, %v207
    %v209 = vsel %vm199, %v206, %v208
    %v210 = vsel %vm198, %v188, %v191
    %v211 = vsel %vm201, %v197, 1326507024
    %v212 = vsel %vm200, %v194, %v211
    %v213 = vsel %vm199, %v210, %v212
    %v214 = vshll.u32 %v174, 8
    %v215 = vmul.u32.u64.compose %v214, %v213
    %v216 = vextract.low.u32 %v215
    %v217 = vextract.high.u32 %v215
    %v218 = vmul.u32.u64.compose %v214, %v209
    %v219 = vextract.low.u32 %v218
    %v220 = vextract.high.u32 %v218
    %v221 = vmul.u32 %v214, %v205
    %v222 = vadd.s32 %v217, %v219
    %vm223 = vc.u32 %v217, %v219
    %v224 = vadd.s32 %v220, 1
    %v225 = vsel %vm223, %v224, %v220
    %v226 = vadd.s32 %v221, %v225
    %v227 = vadd.s32 %v226, 536870912
    %v228 = vshrl.u32 %v227, 30
    %v229 = vshll.u32 %v228, 30
    %v230 = vsub.s32 %v226, %v229
    %vm231 = vcmp.lt.s32.totalorder %v230, 0
    %v232 = vsub.s32 0, %v230
    %v233 = vsel %vm231, %v232, %v230
    %v234 = vclz %v233
    %v235 = vsub.s32 %v234, 2
    %vm236 = vcmp.gt.s32.totalorder 0, %v235
    %v237 = vsel %vm236, 0, %v235
    %v238 = vsub.s32 32, %v237
    %v239 = vshll.u32 %v230, %v237
    %v240 = vshrl.u32 %v222, %v238
    %v241 = vor.u32 %v239, %v240
    %v242 = vsub.s32 4294967266, %v237
    %v243 = vadd.s32 %v242, 127
    %v244 = vshll.u32 %v243, 23
    %v245 = vor.u32 4788187, %v244
    %v246 = vand.u32 2147483647, %v245
    %v248 = vcvt.s32.f32 %v241
    %v249 = vmul.f32 %v248, %v246
    %v250 = vxor.u32 %v249, 2147483648
    %v251 = vsel %vm168, %v250, %v249
    %v252 = vsub.s32 4, %v228
    %v253 = vsel %vm168, %v252, %v228
    %v254 = vsel %vm167, %v133, %v251
    %v255 = vsel %vm167, 0, %v253
    %v256 = vcosq.f32.pop %v254
    %v257 = vsinq.f32.pop %v254
    %vm258 = vweird.f32 %v133
    %v259 = vadd.s32 %v255, 3
    %v260 = vand.u32 %v259, 3
    %vm261 = vcmp.lt.s32.totalorder %v260, 2
    %vm262 = vcmp.eq.s32.totalorder %v260, 0
    %v263 = vxor.u32 %v257, 2147483648
    %v264 = vsel %vm262, %v256, %v263
    %vm265 = vcmp.eq.s32.totalorder %v260, 2
    %v266 = vxor.u32 %v256, 2147483648
    %v267 = vsel %vm265, %v266, %v257
    %v268 = vsel %vm261, %v264, %v267
    %v269 = vsel %vm258, nan, %v268
    %v270 = vand.u32 2147483647, %v135
    %vm271 = vcmp.le.f32.partialorder %v270, 0.7853982
    %vm272 = vcmp.lt.s32.totalorder %v135, 0
    %v273 = vand.u32 %v135, 2139095040
    %v274 = vshrl.u32 %v273, 23
    %v275 = vsub.s32 %v274, 127
    %v276 = vand.u32 2147483647, %v135
    %v277 = vand.u32 %v276, 8388607
    %v278 = vor.u32 %v277, 8388608
    %v279 = vsub.s32 0, %v278
    %v280 = vadd.s32 %v275, 1
    %vm281 = vcmp.gt.s32.totalorder %v280, 0
    %v282 = vsel %vm281, %v280, 0
    %v283 = vshrl.u32 %v282, 5
    %v284 = vand.u32 %v282, 31
    %v285 = vsub.s32 32, %v284
    %v286 = vshrl.u32 683565275, %v285
    %v287 = vshll.u32 683565275, %v284
    %v288 = vshrl.u32 2475754826, %v285
    %v289 = vor.u32 %v287, %v288
    %v290 = vshll.u32 2475754826, %v284
    %v291 = vshrl.u32 2131351028, %v285
    %v292 = vor.u32 %v290, %v291
    %v293 = vshll.u32 2131351028, %v284
    %v294 = vshrl.u32 2102212464, %v285
    %v295 = vor.u32 %v293, %v294
    %v296 = vshll.u32 2102212464, %v284
    %v297 = vshrl.u32 920167782, %v285
    %v298 = vor.u32 %v296, %v297
    %v299 = vshll.u32 920167782, %v284
    %v300 = vshrl.u32 1326507024, %v285
    %v301 = vor.u32 %v299, %v300
    %vm302 = vcmp.lt.s32.totalorder %v283, 1
    %vm303 = vcmp.lt.s32.totalorder %v283, 2
    %vm304 = vcmp.lt.s32.totalorder %v283, 3
    %vm305 = vcmp.lt.s32.totalorder %v283, 4
    %v306 = vsel %vm302, %v286, %v289
    %v307 = vsel %vm305, %v295, 2102212464
    %v308 = vsel %vm304, %v292, %v307
    %v309 = vsel %vm303, %v306, %v308
    %v310 = vsel %vm302, %v289, %v292
    %v311 = vsel %vm305, %v298, 920167782
    %v312 = vsel %vm304, %v295, %v311
    %v313 = vsel %vm303, %v310, %v312
    %v314 = vsel %vm302, %v292, %v295
    %v315 = vsel %vm305, %v301, 1326507024
    %v316 = vsel %vm304, %v298, %v315
    %v317 = vsel %vm303, %v314, %v316
    %v318 = vshll.u32 %v278, 8
    %v319 = vmul.u32.u64.compose %v318, %v317
    %v320 = vextract.low.u32 %v319
    %v321 = vextract.high.u32 %v319
    %v322 = vmul.u32.u64.compose %v318, %v313
    %v323 = vextract.low.u32 %v322
    %v324 = vextract.high.u32 %v322
    %v325 = vmul.u32 %v318, %v309
    %v326 = vadd.s32 %v321, %v323
    %vm327 = vc.u32 %v321, %v323
    %v328 = vadd.s32 %v324, 1
    %v329 = vsel %vm327, %v328, %v324
    %v330 = vadd.s32 %v325, %v329
    %v331 = vadd.s32 %v330, 536870912
    %v332 = vshrl.u32 %v331, 30
    %v333 = vshll.u32 %v332, 30
    %v334 = vsub.s32 %v330, %v333
    %vm335 = vcmp.lt.s32.totalorder %v334, 0
    %v336 = vsub.s32 0, %v334
    %v337 = vsel %vm335, %v336, %v334
    %v338 = vclz %v337
    %v339 = vsub.s32 %v338, 2
    %vm340 = vcmp.gt.s32.totalorder 0, %v339
    %v341 = vsel %vm340, 0, %v339
    %v342 = vsub.s32 32, %v341
    %v343 = vshll.u32 %v334, %v341
    %v344 = vshrl.u32 %v326, %v342
    %v345 = vor.u32 %v343, %v344
    %v346 = vsub.s32 4294967266, %v341
    %v347 = vadd.s32 %v346, 127
    %v348 = vshll.u32 %v347, 23
    %v349 = vor.u32 4788187, %v348
    %v350 = vand.u32 2147483647, %v349
    %v352 = vcvt.s32.f32 %v345
    %v353 = vmul.f32 %v352, %v350
    %v354 = vxor.u32 %v353, 2147483648
    %v355 = vsel %vm272, %v354, %v353
    %v356 = vsub.s32 4, %v332
    %v357 = vsel %vm272, %v356, %v332
    %v358 = vsel %vm271, %v135, %v355
    %v359 = vsel %vm271, 0, %v357
    %v360 = vcosq.f32.pop %v358
    %v361 = vsinq.f32.pop %v358
    %vm362 = vweird.f32 %v135
    %v363 = vadd.s32 %v359, 3
    %v364 = vand.u32 %v363, 3
    %vm365 = vcmp.lt.s32.totalorder %v364, 2
    %vm366 = vcmp.eq.s32.totalorder %v364, 0
    %v367 = vxor.u32 %v361, 2147483648
    %v368 = vsel %vm366, %v360, %v367
    %vm369 = vcmp.eq.s32.totalorder %v364, 2
    %v370 = vxor.u32 %v360, 2147483648
    %v371 = vsel %vm369, %v370, %v361
    %v372 = vsel %vm365, %v368, %v371
    %v373 = vsel %vm362, nan, %v372
    %v374 = vsel %vm164, 1, 0
    %v375 = vsel %vm165, 1, 0
    %vm376 = vcmp.eq.s32.totalorder %v374, 1
    %vm377 = vcmp.eq.s32.totalorder %v375, 1
    %v378 = vsel %vm376, %v133, %v269
    %v379 = vsel %vm377, %v135, %v373
    %v380 = vld [vmem:[%s3] sm:$0xff]
    %v381 = vld [vmem:[%s3 + $0x8] sm:$0xff]
    %v382 = vld [vmem:[%s3 + $0x10] sm:$0xff]
    %v383 = vld [vmem:[%s3 + $0x18] sm:$0xff]
    %v384 = vld [vmem:[%s3 + $0x20] sm:$0xff]
    %v385 = vld [vmem:[%s3 + $0x28] sm:$0xff]
    %v386 = vld [vmem:[%s3 + $0x30] sm:$0xff]
    %v387 = vld [vmem:[%s3 + $0x38] sm:$0xff]
    %v388 = vld [vmem:[%s3 + $0x40] sm:$0xff]
    %v389 = vld [vmem:[%s3 + $0x48] sm:$0xff]
    %v390 = vld [vmem:[%s3 + $0x50] sm:$0xff]
    %v391 = vld [vmem:[%s3 + $0x58] sm:$0xff]
    %v392 = vld [vmem:[%s3 + $0x60] sm:$0xff]
    %v393 = vld [vmem:[%s3 + $0x68] sm:$0xff]
    %v394 = vld [vmem:[%s3 + $0x70] sm:$0xff]
    %v395 = vld [vmem:[%s3 + $0x78] sm:$0xff]
    %v396 = vld [vmem:[%s3 + $0x80] sm:$0xff]
    %v397 = vld [vmem:[%s3 + $0x88] sm:$0xff]
    %v398 = vld [vmem:[%s3 + $0x90] sm:$0xff]
    %v399 = vld [vmem:[%s3 + $0x98] sm:$0xff]
    %v400 = vld [vmem:[%s3 + $0xa0] sm:$0xff]
    %v401 = vld [vmem:[%s3 + $0xa8] sm:$0xff]
    %v402 = vld [vmem:[%s3 + $0xb0] sm:$0xff]
    %v403 = vld [vmem:[%s3 + $0xb8] sm:$0xff]
    %v404 = vld [vmem:[%s3 + $0xc0] sm:$0xff]
    %v405 = vld [vmem:[%s3 + $0xc8] sm:$0xff]
    %v406 = vld [vmem:[%s3 + $0xd0] sm:$0xff]
    %v407 = vld [vmem:[%s3 + $0xd8] sm:$0xff]
    %v408 = vld [vmem:[%s3 + $0xe0] sm:$0xff]
    %v409 = vld [vmem:[%s3 + $0xe8] sm:$0xff]
    %v410 = vld [vmem:[%s3 + $0xf0] sm:$0xff]
    %v411 = vld [vmem:[%s3 + $0xf8] sm:$0xff]
    %v412 = vld [vmem:[%s4] sm:$0x1]
    %v414 = vlaneseq
    %v415 = vshrl.u32 %v414, 7
    %v416 = vsub.s32 0, %v415
    %v417 = vrot.slane %v412, %v416
    %419 = vmatprep.subr.mxu0 0.0
    %420 = vmatpush1.msra.mxu0 %v395
    %421 = vmatprep.subr.mxu0 0.0
    %422 = vmatpush1.msra.mxu0 %v394
    %423 = vmatprep.subr.mxu0 0.0
    %424 = vmatpush1.msra.mxu0 %v393
    %425 = vmatprep.subr.mxu0 0.0
    %426 = vmatpush1.msra.mxu0 %v392
    %427 = vmatprep.subr.mxu0 0.0
    %428 = vmatpush1.msra.mxu0 %v391
    %429 = vmatprep.subr.mxu0 0.0
    %430 = vmatpush1.msra.mxu0 %v390
    %431 = vmatprep.subr.mxu0 0.0
    %432 = vmatpush1.msra.mxu0 %v389
    %433 = vmatprep.subr.mxu0 0.0
    %434 = vmatpush1.msra.mxu0 %v388
    %435 = vmatprep.subr.mxu0 0.0
    %436 = vmatpush1.msra.mxu0 %v387
    %437 = vmatprep.subr.mxu0 0.0
    %438 = vmatpush1.msra.mxu0 %v386
    %439 = vmatprep.subr.mxu0 0.0
    %440 = vmatpush1.msra.mxu0 %v385
    %441 = vmatprep.subr.mxu0 0.0
    %442 = vmatpush1.msra.mxu0 %v384
    %443 = vmatprep.subr.mxu0 0.0
    %444 = vmatpush1.msra.mxu0 %v383
    %445 = vmatprep.subr.mxu0 0.0
    %446 = vmatpush1.msra.mxu0 %v382
    %447 = vmatprep.subr.mxu0 0.0
    %448 = vmatpush1.msra.mxu0 %v381
    %449 = vmatprep.subr.mxu0 0.0
    %450 = vmatpush1.msra.mxu0 %v380
    %451 = vmatprep.subr.mxu0 0.0
    %452 = vmatpush2.msra.mxu0 %v411
    %453 = vmatprep.subr.mxu0 0.0
    %454 = vmatpush2.msra.mxu0 %v410
    %455 = vmatprep.subr.mxu0 0.0
    %456 = vmatpush2.msra.mxu0 %v409
    %457 = vmatprep.subr.mxu0 0.0
    %458 = vmatpush2.msra.mxu0 %v408
    %459 = vmatprep.subr.mxu0 0.0
    %460 = vmatpush2.msra.mxu0 %v407
    %461 = vmatprep.subr.mxu0 0.0
    %462 = vmatpush2.msra.mxu0 %v406
    %463 = vmatprep.subr.mxu0 0.0
    %464 = vmatpush2.msra.mxu0 %v405
    %465 = vmatprep.subr.mxu0 0.0
    %466 = vmatpush2.msra.mxu0 %v404
    %467 = vmatprep.subr.mxu0 0.0
    %468 = vmatpush2.msra.mxu0 %v403
    %469 = vmatprep.subr.mxu0 0.0
    %470 = vmatpush2.msra.mxu0 %v402
    %471 = vmatprep.subr.mxu0 0.0
    %472 = vmatpush2.msra.mxu0 %v401
    %473 = vmatprep.subr.mxu0 0.0
    %474 = vmatpush2.msra.mxu0 %v400
    %475 = vmatprep.subr.mxu0 0.0
    %476 = vmatpush2.msra.mxu0 %v399
    %477 = vmatprep.subr.mxu0 0.0
    %478 = vmatpush2.msra.mxu0 %v398
    %479 = vmatprep.subr.mxu0 0.0
    %480 = vmatpush2.msra.mxu0 %v397
    %481 = vmatprep.subr.mxu0 0.0
    %482 = vmatpush2.msra.mxu0 %v396
    %483 = vmatprep.mubr.f32.mxu0 %v379
    %484 = vmatmul.mubr.f32.gmra.mxu0 %v378
    %v485 = vpop.f32.mrf.mxu0
    %v486 = vadd.f32 %v417, %v485
    %v487 = vpop.f32.mrf.mxu0
    %488 = vdwg.mxu0
    %vm489 = vcmask 130048
    %490 = vst.msk [vmem:[#allocation2] sm:$0xff] %vm489, %v486
    // Predicated region
    $region22: #{tpu_custom_call.1} parent=1 // pred_check
      _
    $region23: #{tpu_custom_call.1} parent=1 // pred_check_branch
      %492 = sbr.rel (0) target = $region25
    $region24: #{tpu_custom_call.1} parent=1 // pred_region
      %s494 = ssub.s32 128, 128
      %495 = vsyncadd [#allocation3], %s494
      %s497 = sshll.u32 [#allocation2], 4
      %s498 = int_to_ptr.vmem [resolvable:$true] %s497
      %500 = dma.vmem_to_hbm [thread:$0]  %s498, 128, %s5, [#allocation3]
    $region25: #{tpu_custom_call.1} parent=1 // pred_fallthru
      _
    // Predicated region
    $region26: #{tpu_custom_call.1} parent=1 // pred_check
      _
    $region27: #{tpu_custom_call.1} parent=1 // pred_check_branch
      %502 = sbr.rel (0) target = $region29
    $region28: #{tpu_custom_call.1} parent=1 // pred_region
      %503 = dma.done [#allocation3], 128
    $region29: #{tpu_custom_call.1} parent=1 // pred_fallthru
      _
    %504 = vsyncpa [#allocation3], 1

</llo_original>
